<compile_context>
chip_gen: v5e
topology: v5e:2x2
jax: 0.10.0
libtpu: 0.0.40
codegen_flags: <defaults>
</compile_context>

<pallas_src>
import functools

import jax
import jax.numpy as jnp
from jax.experimental import pallas as pl
from jax.experimental.pallas import tpu as pltpu


_MASK_BIAS = -9e15            # same constant as the PyTorch GraphAttentionLayer zero_vec
_VMEM_FLOOR = 32 * 1024 * 1024  # proven-safe scoped request (v5e/v6e/v7x default-compatible)
_VMEM_CEIL = 48 * 1024 * 1024   # stays under v7x's 64 MiB/TC physical VMEM


def _row_tile(n, cap=256):
    """Largest row tile (multiple of 8, <= cap) dividing n; falls back to n.

    cap=256 keeps the (TM, N) logits block VMEM-friendly on v7x (64 MiB/TC);
    on v5e/v6e with a raised vmem limit a 512 cap would also be reasonable.
    """
    for t in (512, 256, 128, 64, 32, 16, 8):
        if t <= cap and n % t == 0:
            return t
    return n  # TODO(synk): pad N for awkward sizes instead of one giant block


def _clamp_vmem(nbytes):
    return int(min(max(nbytes, _VMEM_FLOOR), _VMEM_CEIL))


def _build_wide_weights(w_stack, a_stack):
    """[W_0 | ... | W_{H-1} | W_0 a1_0 ... | W_0 a2_0 ...]  -> (F_in, H*F_out + 2H)."""
    nheads, f_in, f_out = w_stack.shape
    w_cols = jnp.transpose(w_stack, (1, 0, 2)).reshape(f_in, nheads * f_out)
    wa1 = jnp.einsum("hif,hf->ih", w_stack, a_stack[:, 0, :])   # (F_in, H)
    wa2 = jnp.einsum("hif,hf->ih", w_stack, a_stack[:, 1, :])   # (F_in, H)
    return jnp.concatenate([w_cols, wa1, wa2], axis=1)


# ---------------------------------------------------------------------------
# Kernel 1: fused multi-head projection + attention-logit columns
#   [H_all | f1 | f2] = x @ [W_0 | ... | W_{H-1} | W a1 | W a2]
# ---------------------------------------------------------------------------
def _proj_kernel(x_ref, w_ref, h_ref, f_ref, *, hf):
    # x_ref: (TM, F_in) bf16, w_ref: (F_in, HF+2H) bf16
    # h_ref: (TM, HF) bf16 (projected features), f_ref: (TM, 2H) f32 (f1|f2 logit columns)
    acc = jnp.dot(x_ref[...], w_ref[...], preferred_element_type=jnp.float32)
    h_ref[...] = acc[:, :hf].astype(h_ref.dtype)
    f_ref[...] = acc[:, hf:]


def _project(x_bf16, w_wide_bf16, hf):
    n, f_in = x_bf16.shape
    wtot = w_wide_bf16.shape[1]
    n_extra = wtot - hf
    tm = _row_tile(n)
    need = 2 * (tm * f_in * 2 + f_in * wtot * 2 + tm * hf * 2 + tm * n_extra * 4) \
        + tm * wtot * 4 + (2 << 20)
    return pl.pallas_call(
        functools.partial(_proj_kernel, hf=hf),
        out_shape=(
            jax.ShapeDtypeStruct((n, hf), jnp.bfloat16),
            jax.ShapeDtypeStruct((n, n_extra), jnp.float32),
        ),
        grid_spec=pltpu.PrefetchScalarGridSpec(
            num_scalar_prefetch=0,
            grid=(n // tm,),
            in_specs=[
                pl.BlockSpec((tm, f_in), lambda i: (i, 0)),
                pl.BlockSpec((f_in, wtot), lambda i: (0, 0)),
            ],
            out_specs=(
                pl.BlockSpec((tm, hf), lambda i: (i, 0)),
                pl.BlockSpec((tm, n_extra), lambda i: (i, 0)),
            ),
        ),
        compiler_params=pltpu.CompilerParams(
            dimension_semantics=("parallel",),
            vmem_limit_bytes=_clamp_vmem(need),
        ),
    )(x_bf16, w_wide_bf16)


# ---------------------------------------------------------------------------
# Kernel 2: row-tiled multi-head attention (masked softmax + aggregation + ELU)
# ---------------------------------------------------------------------------
def _gat_attn_kernel(hfull_ref, f1_ref, f2t_ref, bias_ref, out_ref, *,
                     alpha, nheads, f_out):
    # hfull_ref: (N,  H*F_out) bf16  projected features of every node (constant block)
    # f1_ref:    (TM, H)       f32   h_i . a1  per head (row tile)
    # f2t_ref:   (H, N)        f32   h_j . a2  per head (constant block, pre-transposed)
    # bias_ref:  (TM, N)       bf16  additive adjacency mask (0 / -9e15), shared by heads
    # out_ref:   (TM, H*F_out)       head-concatenated, lane-dense output
    h_full = hfull_ref[...]                               # bf16, fed straight to the MXU
    bias = bias_ref[...].astype(jnp.float32)              # cast once per tile (shared by heads)

    outs = []
    for hd in range(nheads):                              # static unroll over heads
        c0 = hd * f_out
        # e[i, j] = LeakyReLU(h_i.a1 + h_j.a2) + mask_bias[i, j]   (f1/f2 hoisted to MXU)
        s = f1_ref[:, hd:hd + 1] + f2t_ref[hd:hd + 1, :]  # (TM, N) f32
        e = jnp.maximum(s, alpha * s) + bias              # LeakyReLU via max (1 VALU op less)

        # un-normalized, numerically stable softmax over neighbors j
        e = e - jnp.max(e, axis=-1, keepdims=True)
        p = jnp.exp(e)                                    # f32 EUP exp (TODO(synk): bf16 on v6e/v7x)
        denom = jnp.sum(p, axis=-1, keepdims=True)        # (TM, 1) f32

        # value aggregation on the MXU (bf16 x bf16 -> f32 acc); normalization deferred
        hp = jnp.dot(p.astype(jnp.bfloat16), h_full[:, c0:c0 + f_out],
                     preferred_element_type=jnp.float32)  # (TM, F_out)
        hp = hp * pl.reciprocal(denom, approx=True)       # EUP reciprocal (free slot)
        hp = jnp.where(hp > 0.0, hp, jnp.exp(jnp.minimum(hp, 0.0)) - 1.0)  # ELU, overflow-safe
        outs.append(hp)

    merged = outs[0] if nheads == 1 else jnp.concatenate(outs, axis=-1)
    out_ref[...] = merged.astype(out_ref.dtype)           # single lane-dense store per tile


def gat_attention_layer(x_bf16, w_stack, a_stack, bias, *, alpha, out_dtype=jnp.float32):
    """One dense GAT layer, all heads fused.

    x_bf16:  (N, F_in) bf16
    w_stack: (H, F_in, F_out) per-head projection weights
    a_stack: (H, 2, F_out)    per-head attention vectors (a split as [a1; a2])
    bias:    (N, N) bf16 additive mask (0 where adj > 0 else -9e15)
    returns: (N, H*F_out) out_dtype, ELU applied, heads concatenated (torch.cat dim=1 layout)
    """
    n = x_bf16.shape[0]
    nheads, f_in, f_out = w_stack.shape
    hf = nheads * f_out
    assert x_bf16.shape[1] == f_in

    # One wide MXU pass: projected features (bf16) + per-head f1/f2 logit columns (f32).
    w_wide = _build_wide_weights(w_stack, a_stack).astype(jnp.bfloat16)
    h_all, f_cols = _project(x_bf16, w_wide, hf)
    f1 = f_cols[:, :nheads]                      # (N, H) f32, row-tiled below
    f2_t = jnp.transpose(f_cols[:, nheads:])     # (H, N) f32, pre-transposed once (tiny)

    tm = _row_tile(n)
    need = (2 * (n * hf * 2 + nheads * n * 4)                    # constant blocks (dbl-buffered)
            + 2 * (tm * n * 2 + tm * nheads * 4 + tm * hf * 4)   # streamed blocks
            + 4 * tm * n * 4 + (2 << 20))                        # (TM,N) f32 intermediates
    kernel = functools.partial(_gat_attn_kernel, alpha=alpha,
                               nheads=nheads, f_out=f_out)
    return pl.pallas_call(
        kernel,
        out_shape=jax.ShapeDtypeStruct((n, hf), out_dtype),
        grid_spec=pltpu.PrefetchScalarGridSpec(
            num_scalar_prefetch=0,
            grid=(n // tm,),
            in_specs=[
                pl.BlockSpec((n, hf), lambda i: (0, 0)),         # full bf16 H_all (constant)
                pl.BlockSpec((tm, nheads), lambda i: (i, 0)),    # f1 rows of this tile
                pl.BlockSpec((nheads, n), lambda i: (0, 0)),     # f2 (pre-transposed, constant)
                pl.BlockSpec((tm, n), lambda i: (i, 0)),         # bf16 adjacency bias rows
            ],
            out_specs=pl.BlockSpec((tm, hf), lambda i: (i, 0)),
        ),
        compiler_params=pltpu.CompilerParams(
            dimension_semantics=("parallel",),                   # independent row tiles
            vmem_limit_bytes=_clamp_vmem(need),
        ),
    )(h_all, f1, f2_t, bias)


def gat_forward(state, adj, params, *, alpha):
    """Full GAT forward (eval mode: dropout == identity)."""
    # TODO(synk): training-mode dropout (on inputs and attention weights) not implemented.
    # Shared additive adjacency bias (both layers, every head), bf16 to halve the N^2 DMA.
    bias = jnp.where(adj > 0, 0.0, _MASK_BIAS).astype(jnp.bfloat16)
    # Hidden layer: output stays bf16 (layer 2's projection consumes bf16 anyway).
    x = gat_attention_layer(state.astype(jnp.bfloat16), params["W_heads"], params["a_heads"],
                            bias, alpha=alpha, out_dtype=jnp.bfloat16)
    # Output layer (single "head"); GAT.forward applies F.elu afterwards, which the
    # in-kernel ELU reproduces.  Final output in f32.
    out = gat_attention_layer(x, params["W_out"][None], params["a_out"][None],
                              bias, alpha=alpha, out_dtype=jnp.float32)
    return out


def gat_reference(state, adj, params, *, alpha):
    """Pure-JAX reference mirroring the PyTorch module in eval mode.

    All mixed-precision choices (bf16 MXU operands with f32 accumulation, bf16 H_all,
    bf16 hidden-layer output, bf16 mask bias) are replicated so the comparison isolates
    kernel bugs from expected TPU rounding.  The only unmatched kernel detail is the
    approximate EUP reciprocal, covered by the test tolerance.
    """
    bias = jnp.where(adj > 0, 0.0, _MASK_BIAS).astype(jnp.bfloat16).astype(jnp.float32)

    def layer(x_bf16, w_stack, a_stack, out_dtype):
        nheads, _, f_out = w_stack.shape
        hf = nheads * f_out
        w_wide = _build_wide_weights(w_stack, a_stack).astype(jnp.bfloat16)
        acc = jnp.dot(x_bf16, w_wide, preferred_element_type=jnp.float32)
        h_all = acc[:, :hf].astype(jnp.bfloat16)
        f1 = acc[:, hf:hf + nheads]
        f2 = acc[:, hf + nheads:]
        outs = []
        for hd in range(nheads):
            s = f1[:, hd:hd + 1] + f2[:, hd:hd + 1].T
            e = jnp.maximum(s, alpha * s) + bias
            e = e - jnp.max(e, axis=-1, keepdims=True)
            p = jnp.exp(e)
            denom = jnp.sum(p, axis=-1, keepdims=True)
            hp = jnp.dot(p.astype(jnp.bfloat16), h_all[:, hd * f_out:(hd + 1) * f_out],
                         preferred_element_type=jnp.float32) / denom
            outs.append(jnp.where(hp > 0.0, hp, jnp.exp(jnp.minimum(hp, 0.0)) - 1.0))
        return jnp.concatenate(outs, axis=-1).astype(out_dtype)

    x = layer(state.astype(jnp.bfloat16), params["W_heads"], params["a_heads"], jnp.bfloat16)
    return layer(x, params["W_out"][None], params["a_out"][None], jnp.float32)


def init_params(key, nfeat, nhid, output, nheads):
    k1, k2, k3, k4 = jax.random.split(key, 4)
    scale_in = 1.414 * (6.0 / (nfeat + nhid)) ** 0.5          # ~ xavier_uniform gain=1.414
    scale_a = 1.414 * (6.0 / (2 * nhid + 1)) ** 0.5
    W_heads = jax.random.uniform(k1, (nheads, nfeat, nhid), jnp.float32,
                                 -scale_in, scale_in)
    a_heads = jax.random.uniform(k2, (nheads, 2, nhid), jnp.float32,
                                 -scale_a, scale_a)
    scale_out = 1.414 * (6.0 / (nhid * nheads + output)) ** 0.5
    scale_ao = 1.414 * (6.0 / (2 * output + 1)) ** 0.5
    W_out = jax.random.uniform(k3, (nhid * nheads, output), jnp.float32,
                               -scale_out, scale_out)
    a_out = jax.random.uniform(k4, (2, output), jnp.float32, -scale_ao, scale_ao)
    return {"W_heads": W_heads, "a_heads": a_heads, "W_out": W_out, "a_out": a_out}


if __name__ == "__main__":
    # Small, module-consistent shapes: N nodes (agents), nfeat features.
    N, nfeat, nhid, output, nheads = 8, 32, 16, 16, 2
    alpha = 0.2

    key = jax.random.PRNGKey(0)
    k_state, k_adj, k_params = jax.random.split(key, 3)

    state = jax.random.normal(k_state, (N, nfeat), jnp.float32)
    adj = (jax.random.uniform(k_adj, (N, N)) > 0.5).astype(jnp.float32)
    adj = jnp.maximum(adj, jnp.eye(N, dtype=jnp.float32))  # self loops

    params = init_params(k_params, nfeat, nhid, output, nheads)

    fwd = jax.jit(functools.partial(gat_forward, alpha=alpha))
    out = jax.block_until_ready(fwd(state, adj, params))

    ref = gat_reference(state, adj, params, alpha=alpha)
    assert out.shape == (N, output)
    # Tolerance covers the kernel's approximate EUP reciprocal (only unmatched detail).
    assert jnp.allclose(out, ref, atol=2e-2, rtol=2e-2), "mismatch vs reference"

    print("KERNEL_OK")
</pallas_src>

<mosaic_0001>
module attributes {stable_mosaic.version = 11 : i64} {
  func.func @_proj_kernel(%arg0: i32, %arg1: memref<8x32xbf16, #tpu.memory_space<vmem>>, %arg2: memref<32x36xbf16, #tpu.memory_space<vmem>>, %arg3: memref<8x32xbf16, #tpu.memory_space<vmem>>, %arg4: memref<8x4xf32, #tpu.memory_space<vmem>>) attributes {dimension_semantics = [#tpu.dimension_semantics<parallel>], iteration_bounds = array<i64: 1>, scalar_prefetch = 0 : i64, scratch_operands = 0 : i64, tpu.core_type = #tpu.core_type<tc>, window_params = [{transform_indices = @transform_0, window_bounds = array<i64: 8, 32>}, {pipeline_mode = #tpu.pipeline_mode<synchronous>, transform_indices = @transform_1, window_bounds = array<i64: 32, 36>}, {transform_indices = @transform_2, window_bounds = array<i64: 8, 32>}, {transform_indices = @transform_3, window_bounds = array<i64: 8, 4>}]} {
    %c0 = arith.constant 0 : index
    %c0_0 = arith.constant 0 : index
    %0 = vector.load %arg1[%c0, %c0_0] : memref<8x32xbf16, #tpu.memory_space<vmem>>, vector<8x32xbf16>
    %c0_1 = arith.constant 0 : index
    %c0_2 = arith.constant 0 : index
    %1 = vector.load %arg2[%c0_1, %c0_2] : memref<32x36xbf16, #tpu.memory_space<vmem>>, vector<32x36xbf16>
    %cst = arith.constant dense<0.000000e+00> : vector<8x36xf32>
    %2 = tpu.matmul %0, %1, %cst {dimension_numbers = #tpu.dot_dimension_numbers<[1], [0], [0], [1], [0, 0, 1, 1], [], []>} : vector<8x32xbf16>, vector<32x36xbf16>, vector<8x36xf32> -> vector<8x36xf32>
    %3 = vector.extract_strided_slice %2 {offsets = [0, 0], sizes = [8, 32], strides = [1, 1]} : vector<8x36xf32> to vector<8x32xf32>
    %4 = arith.truncf %3 : vector<8x32xf32> to vector<8x32xbf16>
    %c0_3 = arith.constant 0 : index
    %c0_4 = arith.constant 0 : index
    %5 = vector.load %arg3[%c0_3, %c0_4] : memref<8x32xbf16, #tpu.memory_space<vmem>>, vector<8x32xbf16>
    tpu.vector_store %arg3[%c0_3, %c0_4], %4 {strides = array<i32>} : memref<8x32xbf16, #tpu.memory_space<vmem>>, vector<8x32xbf16>,
    %6 = vector.extract_strided_slice %2 {offsets = [0, 32], sizes = [8, 4], strides = [1, 1]} : vector<8x36xf32> to vector<8x4xf32>
    %c0_5 = arith.constant 0 : index
    %c0_6 = arith.constant 0 : index
    %7 = vector.load %arg4[%c0_5, %c0_6] : memref<8x4xf32, #tpu.memory_space<vmem>>, vector<8x4xf32>
    tpu.vector_store %arg4[%c0_5, %c0_6], %6 {strides = array<i32>} : memref<8x4xf32, #tpu.memory_space<vmem>>, vector<8x4xf32>,
    return
  }
  func.func @transform_0(%arg0: i32) -> (i32, i32) {
    %c0_i32 = arith.constant 0 : i32
    %c0_i32_0 = arith.constant 0 : i32
    return %arg0, %c0_i32 : i32, i32
  }
  func.func @transform_1(%arg0: i32) -> (i32, i32) {
    %c0_i32 = arith.constant 0 : i32
    %c0_i32_0 = arith.constant 0 : i32
    %c0_i32_1 = arith.constant 0 : i32
    return %c0_i32, %c0_i32_0 : i32, i32
  }
  func.func @transform_2(%arg0: i32) -> (i32, i32) {
    %c0_i32 = arith.constant 0 : i32
    %c0_i32_0 = arith.constant 0 : i32
    return %arg0, %c0_i32 : i32, i32
  }
  func.func @transform_3(%arg0: i32) -> (i32, i32) {
    %c0_i32 = arith.constant 0 : i32
    %c0_i32_0 = arith.constant 0 : i32
    return %arg0, %c0_i32 : i32, i32
  }
}

module attributes {stable_mosaic.version = 11 : i64} {
  func.func @_gat_attn_kernel(%arg0: i32, %arg1: memref<8x32xbf16, #tpu.memory_space<vmem>>, %arg2: memref<8x2xf32, #tpu.memory_space<vmem>>, %arg3: memref<2x8xf32, #tpu.memory_space<vmem>>, %arg4: memref<8x8xbf16, #tpu.memory_space<vmem>>, %arg5: memref<8x32xbf16, #tpu.memory_space<vmem>>) attributes {dimension_semantics = [#tpu.dimension_semantics<parallel>], iteration_bounds = array<i64: 1>, scalar_prefetch = 0 : i64, scratch_operands = 0 : i64, tpu.core_type = #tpu.core_type<tc>, window_params = [{pipeline_mode = #tpu.pipeline_mode<synchronous>, transform_indices = @transform_0, window_bounds = array<i64: 8, 32>}, {transform_indices = @transform_1, window_bounds = array<i64: 8, 2>}, {pipeline_mode = #tpu.pipeline_mode<synchronous>, transform_indices = @transform_2, window_bounds = array<i64: 2, 8>}, {transform_indices = @transform_3, window_bounds = array<i64: 8, 8>}, {transform_indices = @transform_4, window_bounds = array<i64: 8, 32>}]} {
    %c0 = arith.constant 0 : index
    %c0_0 = arith.constant 0 : index
    %0 = vector.load %arg1[%c0, %c0_0] : memref<8x32xbf16, #tpu.memory_space<vmem>>, vector<8x32xbf16>
    %c0_1 = arith.constant 0 : index
    %c0_2 = arith.constant 0 : index
    %1 = vector.load %arg4[%c0_1, %c0_2] : memref<8x8xbf16, #tpu.memory_space<vmem>>, vector<8x8xbf16>
    %2 = arith.extf %1 : vector<8x8xbf16> to vector<8x8xf32>
    %c0_3 = arith.constant 0 : index
    %c0_4 = arith.constant 0 : index
    %3 = vector.load %arg2[%c0_3, %c0_4] : memref<8x2xf32, #tpu.memory_space<vmem>>, vector<8x1xf32>
    %c0_5 = arith.constant 0 : index
    %c0_6 = arith.constant 0 : index
    %4 = vector.load %arg3[%c0_5, %c0_6] : memref<2x8xf32, #tpu.memory_space<vmem>>, vector<1x8xf32>
    %5 = vector.broadcast %3 : vector<8x1xf32> to vector<8x8xf32>
    %6 = vector.broadcast %4 : vector<1x8xf32> to vector<8x8xf32>
    %7 = arith.addf %5, %6 : vector<8x8xf32>
    %cst = arith.constant 2.000000e-01 : f32
    %8 = vector.broadcast %cst : f32 to vector<8x8xf32>
    %9 = arith.mulf %8, %7 : vector<8x8xf32>
    %10 = arith.maximumf %7, %9 : vector<8x8xf32>
    %11 = arith.addf %10, %2 : vector<8x8xf32>
    %cst_7 = arith.constant dense<0xFF800000> : vector<8xf32>
    %12 = vector.multi_reduction <maximumf>, %11, %cst_7 [1] : vector<8x8xf32> to vector<8xf32>
    %13 = vector.shape_cast %12 : vector<8xf32> to vector<8x1xf32>
    %14 = vector.broadcast %13 : vector<8x1xf32> to vector<8x8xf32>
    %15 = arith.subf %11, %14 : vector<8x8xf32>
    %16 = math.exp %15 : vector<8x8xf32>
    %cst_8 = arith.constant dense<0.000000e+00> : vector<8xf32>
    %17 = vector.multi_reduction <add>, %16, %cst_8 [1] : vector<8x8xf32> to vector<8xf32>
    %18 = vector.shape_cast %17 : vector<8xf32> to vector<8x1xf32>
    %19 = arith.truncf %16 : vector<8x8xf32> to vector<8x8xbf16>
    %20 = vector.extract_strided_slice %0 {offsets = [0, 0], sizes = [8, 16], strides = [1, 1]} : vector<8x32xbf16> to vector<8x16xbf16>
    %cst_9 = arith.constant dense<0.000000e+00> : vector<8x16xf32>
    %21 = tpu.matmul %19, %20, %cst_9 {dimension_numbers = #tpu.dot_dimension_numbers<[1], [0], [0], [1], [0, 0, 1, 1], [], []>} : vector<8x8xbf16>, vector<8x16xbf16>, vector<8x16xf32> -> vector<8x16xf32>
    %22 = tpu.reciprocal %18 {approx = true} : vector<8x1xf32> -> vector<8x1xf32>
    %23 = vector.broadcast %22 : vector<8x1xf32> to vector<8x16xf32>
    %24 = arith.mulf %21, %23 : vector<8x16xf32>
    %cst_10 = arith.constant 0.000000e+00 : f32
    %25 = vector.broadcast %cst_10 : f32 to vector<8x16xf32>
    %26 = arith.cmpf ogt, %24, %25 : vector<8x16xf32>
    %cst_11 = arith.constant 0.000000e+00 : f32
    %27 = vector.broadcast %cst_11 : f32 to vector<8x16xf32>
    %28 = arith.minimumf %24, %27 : vector<8x16xf32>
    %29 = math.exp %28 : vector<8x16xf32>
    %cst_12 = arith.constant 1.000000e+00 : f32
    %30 = vector.broadcast %cst_12 : f32 to vector<8x16xf32>
    %31 = arith.subf %29, %30 : vector<8x16xf32>
    %32 = arith.select %26, %24, %31 : vector<8x16xi1>, vector<8x16xf32>
    %c0_13 = arith.constant 0 : index
    %c1 = arith.constant 1 : index
    %33 = vector.load %arg2[%c0_13, %c1] : memref<8x2xf32, #tpu.memory_space<vmem>>, vector<8x1xf32>
    %c1_14 = arith.constant 1 : index
    %c0_15 = arith.constant 0 : index
    %34 = vector.load %arg3[%c1_14, %c0_15] : memref<2x8xf32, #tpu.memory_space<vmem>>, vector<1x8xf32>
    %35 = vector.broadcast %33 : vector<8x1xf32> to vector<8x8xf32>
    %36 = vector.broadcast %34 : vector<1x8xf32> to vector<8x8xf32>
    %37 = arith.addf %35, %36 : vector<8x8xf32>
    %cst_16 = arith.constant 2.000000e-01 : f32
    %38 = vector.broadcast %cst_16 : f32 to vector<8x8xf32>
    %39 = arith.mulf %38, %37 : vector<8x8xf32>
    %40 = arith.maximumf %37, %39 : vector<8x8xf32>
    %41 = arith.addf %40, %2 : vector<8x8xf32>
    %cst_17 = arith.constant dense<0xFF800000> : vector<8xf32>
    %42 = vector.multi_reduction <maximumf>, %41, %cst_17 [1] : vector<8x8xf32> to vector<8xf32>
    %43 = vector.shape_cast %42 : vector<8xf32> to vector<8x1xf32>
    %44 = vector.broadcast %43 : vector<8x1xf32> to vector<8x8xf32>
    %45 = arith.subf %41, %44 : vector<8x8xf32>
    %46 = math.exp %45 : vector<8x8xf32>
    %cst_18 = arith.constant dense<0.000000e+00> : vector<8xf32>
    %47 = vector.multi_reduction <add>, %46, %cst_18 [1] : vector<8x8xf32> to vector<8xf32>
    %48 = vector.shape_cast %47 : vector<8xf32> to vector<8x1xf32>
    %49 = arith.truncf %46 : vector<8x8xf32> to vector<8x8xbf16>
    %50 = vector.extract_strided_slice %0 {offsets = [0, 16], sizes = [8, 16], strides = [1, 1]} : vector<8x32xbf16> to vector<8x16xbf16>
    %cst_19 = arith.constant dense<0.000000e+00> : vector<8x16xf32>
    %51 = tpu.matmul %49, %50, %cst_19 {dimension_numbers = #tpu.dot_dimension_numbers<[1], [0], [0], [1], [0, 0, 1, 1], [], []>} : vector<8x8xbf16>, vector<8x16xbf16>, vector<8x16xf32> -> vector<8x16xf32>
    %52 = tpu.reciprocal %48 {approx = true} : vector<8x1xf32> -> vector<8x1xf32>
    %53 = vector.broadcast %52 : vector<8x1xf32> to vector<8x16xf32>
    %54 = arith.mulf %51, %53 : vector<8x16xf32>
    %cst_20 = arith.constant 0.000000e+00 : f32
    %55 = vector.broadcast %cst_20 : f32 to vector<8x16xf32>
    %56 = arith.cmpf ogt, %54, %55 : vector<8x16xf32>
    %cst_21 = arith.constant 0.000000e+00 : f32
    %57 = vector.broadcast %cst_21 : f32 to vector<8x16xf32>
    %58 = arith.minimumf %54, %57 : vector<8x16xf32>
    %59 = math.exp %58 : vector<8x16xf32>
    %cst_22 = arith.constant 1.000000e+00 : f32
    %60 = vector.broadcast %cst_22 : f32 to vector<8x16xf32>
    %61 = arith.subf %59, %60 : vector<8x16xf32>
    %62 = arith.select %56, %54, %61 : vector<8x16xi1>, vector<8x16xf32>
    %63 = tpu.concatenate %32, %62 in 1 : vector<8x16xf32>, vector<8x16xf32> -> vector<8x32xf32>
    %64 = arith.truncf %63 : vector<8x32xf32> to vector<8x32xbf16>
    %c0_23 = arith.constant 0 : index
    %c0_24 = arith.constant 0 : index
    %65 = vector.load %arg5[%c0_23, %c0_24] : memref<8x32xbf16, #tpu.memory_space<vmem>>, vector<8x32xbf16>
    tpu.vector_store %arg5[%c0_23, %c0_24], %64 {strides = array<i32>} : memref<8x32xbf16, #tpu.memory_space<vmem>>, vector<8x32xbf16>,
    return
  }
  func.func @transform_0(%arg0: i32) -> (i32, i32) {
    %c0_i32 = arith.constant 0 : i32
    %c0_i32_0 = arith.constant 0 : i32
    %c0_i32_1 = arith.constant 0 : i32
    return %c0_i32, %c0_i32_0 : i32, i32
  }
  func.func @transform_1(%arg0: i32) -> (i32, i32) {
    %c0_i32 = arith.constant 0 : i32
    %c0_i32_0 = arith.constant 0 : i32
    return %arg0, %c0_i32 : i32, i32
  }
  func.func @transform_2(%arg0: i32) -> (i32, i32) {
    %c0_i32 = arith.constant 0 : i32
    %c0_i32_0 = arith.constant 0 : i32
    %c0_i32_1 = arith.constant 0 : i32
    return %c0_i32, %c0_i32_0 : i32, i32
  }
  func.func @transform_3(%arg0: i32) -> (i32, i32) {
    %c0_i32 = arith.constant 0 : i32
    %c0_i32_0 = arith.constant 0 : i32
    return %arg0, %c0_i32 : i32, i32
  }
  func.func @transform_4(%arg0: i32) -> (i32, i32) {
    %c0_i32 = arith.constant 0 : i32
    %c0_i32_0 = arith.constant 0 : i32
    return %arg0, %c0_i32 : i32, i32
  }
}

module attributes {stable_mosaic.version = 11 : i64} {
  func.func @_proj_kernel(%arg0: i32, %arg1: memref<8x32xbf16, #tpu.memory_space<vmem>>, %arg2: memref<32x18xbf16, #tpu.memory_space<vmem>>, %arg3: memref<8x16xbf16, #tpu.memory_space<vmem>>, %arg4: memref<8x2xf32, #tpu.memory_space<vmem>>) attributes {dimension_semantics = [#tpu.dimension_semantics<parallel>], iteration_bounds = array<i64: 1>, scalar_prefetch = 0 : i64, scratch_operands = 0 : i64, tpu.core_type = #tpu.core_type<tc>, window_params = [{transform_indices = @transform_0, window_bounds = array<i64: 8, 32>}, {pipeline_mode = #tpu.pipeline_mode<synchronous>, transform_indices = @transform_1, window_bounds = array<i64: 32, 18>}, {transform_indices = @transform_2, window_bounds = array<i64: 8, 16>}, {transform_indices = @transform_3, window_bounds = array<i64: 8, 2>}]} {
    %c0 = arith.constant 0 : index
    %c0_0 = arith.constant 0 : index
    %0 = vector.load %arg1[%c0, %c0_0] : memref<8x32xbf16, #tpu.memory_space<vmem>>, vector<8x32xbf16>
    %c0_1 = arith.constant 0 : index
    %c0_2 = arith.constant 0 : index
    %1 = vector.load %arg2[%c0_1, %c0_2] : memref<32x18xbf16, #tpu.memory_space<vmem>>, vector<32x18xbf16>
    %cst = arith.constant dense<0.000000e+00> : vector<8x18xf32>
    %2 = tpu.matmul %0, %1, %cst {dimension_numbers = #tpu.dot_dimension_numbers<[1], [0], [0], [1], [0, 0, 1, 1], [], []>} : vector<8x32xbf16>, vector<32x18xbf16>, vector<8x18xf32> -> vector<8x18xf32>
    %3 = vector.extract_strided_slice %2 {offsets = [0, 0], sizes = [8, 16], strides = [1, 1]} : vector<8x18xf32> to vector<8x16xf32>
    %4 = arith.truncf %3 : vector<8x16xf32> to vector<8x16xbf16>
    %c0_3 = arith.constant 0 : index
    %c0_4 = arith.constant 0 : index
    %5 = vector.load %arg3[%c0_3, %c0_4] : memref<8x16xbf16, #tpu.memory_space<vmem>>, vector<8x16xbf16>
    tpu.vector_store %arg3[%c0_3, %c0_4], %4 {strides = array<i32>} : memref<8x16xbf16, #tpu.memory_space<vmem>>, vector<8x16xbf16>,
    %6 = vector.extract_strided_slice %2 {offsets = [0, 16], sizes = [8, 2], strides = [1, 1]} : vector<8x18xf32> to vector<8x2xf32>
    %c0_5 = arith.constant 0 : index
    %c0_6 = arith.constant 0 : index
    %7 = vector.load %arg4[%c0_5, %c0_6] : memref<8x2xf32, #tpu.memory_space<vmem>>, vector<8x2xf32>
    tpu.vector_store %arg4[%c0_5, %c0_6], %6 {strides = array<i32>} : memref<8x2xf32, #tpu.memory_space<vmem>>, vector<8x2xf32>,
    return
  }
  func.func @transform_0(%arg0: i32) -> (i32, i32) {
    %c0_i32 = arith.constant 0 : i32
    %c0_i32_0 = arith.constant 0 : i32
    return %arg0, %c0_i32 : i32, i32
  }
  func.func @transform_1(%arg0: i32) -> (i32, i32) {
    %c0_i32 = arith.constant 0 : i32
    %c0_i32_0 = arith.constant 0 : i32
    %c0_i32_1 = arith.constant 0 : i32
    return %c0_i32, %c0_i32_0 : i32, i32
  }
  func.func @transform_2(%arg0: i32) -> (i32, i32) {
    %c0_i32 = arith.constant 0 : i32
    %c0_i32_0 = arith.constant 0 : i32
    return %arg0, %c0_i32 : i32, i32
  }
  func.func @transform_3(%arg0: i32) -> (i32, i32) {
    %c0_i32 = arith.constant 0 : i32
    %c0_i32_0 = arith.constant 0 : i32
    return %arg0, %c0_i32 : i32, i32
  }
}

module attributes {stable_mosaic.version = 11 : i64} {
  func.func @_gat_attn_kernel(%arg0: i32, %arg1: memref<8x16xbf16, #tpu.memory_space<vmem>>, %arg2: memref<8x1xf32, #tpu.memory_space<vmem>>, %arg3: memref<1x8xf32, #tpu.memory_space<vmem>>, %arg4: memref<8x8xbf16, #tpu.memory_space<vmem>>, %arg5: memref<8x16xf32, #tpu.memory_space<vmem>>) attributes {dimension_semantics = [#tpu.dimension_semantics<parallel>], iteration_bounds = array<i64: 1>, scalar_prefetch = 0 : i64, scratch_operands = 0 : i64, tpu.core_type = #tpu.core_type<tc>, window_params = [{pipeline_mode = #tpu.pipeline_mode<synchronous>, transform_indices = @transform_0, window_bounds = array<i64: 8, 16>}, {transform_indices = @transform_1, window_bounds = array<i64: 8, 1>}, {pipeline_mode = #tpu.pipeline_mode<synchronous>, transform_indices = @transform_2, window_bounds = array<i64: 1, 8>}, {transform_indices = @transform_3, window_bounds = array<i64: 8, 8>}, {transform_indices = @transform_4, window_bounds = array<i64: 8, 16>}]} {
    %c0 = arith.constant 0 : index
    %c0_0 = arith.constant 0 : index
    %0 = vector.load %arg1[%c0, %c0_0] : memref<8x16xbf16, #tpu.memory_space<vmem>>, vector<8x16xbf16>
    %c0_1 = arith.constant 0 : index
    %c0_2 = arith.constant 0 : index
    %1 = vector.load %arg4[%c0_1, %c0_2] : memref<8x8xbf16, #tpu.memory_space<vmem>>, vector<8x8xbf16>
    %2 = arith.extf %1 : vector<8x8xbf16> to vector<8x8xf32>
    %c0_3 = arith.constant 0 : index
    %c0_4 = arith.constant 0 : index
    %3 = vector.load %arg2[%c0_3, %c0_4] : memref<8x1xf32, #tpu.memory_space<vmem>>, vector<8x1xf32>
    %c0_5 = arith.constant 0 : index
    %c0_6 = arith.constant 0 : index
    %4 = vector.load %arg3[%c0_5, %c0_6] : memref<1x8xf32, #tpu.memory_space<vmem>>, vector<1x8xf32>
    %5 = vector.broadcast %3 : vector<8x1xf32> to vector<8x8xf32>
    %6 = vector.broadcast %4 : vector<1x8xf32> to vector<8x8xf32>
    %7 = arith.addf %5, %6 : vector<8x8xf32>
    %cst = arith.constant 2.000000e-01 : f32
    %8 = vector.broadcast %cst : f32 to vector<8x8xf32>
    %9 = arith.mulf %8, %7 : vector<8x8xf32>
    %10 = arith.maximumf %7, %9 : vector<8x8xf32>
    %11 = arith.addf %10, %2 : vector<8x8xf32>
    %cst_7 = arith.constant dense<0xFF800000> : vector<8xf32>
    %12 = vector.multi_reduction <maximumf>, %11, %cst_7 [1] : vector<8x8xf32> to vector<8xf32>
    %13 = vector.shape_cast %12 : vector<8xf32> to vector<8x1xf32>
    %14 = vector.broadcast %13 : vector<8x1xf32> to vector<8x8xf32>
    %15 = arith.subf %11, %14 : vector<8x8xf32>
    %16 = math.exp %15 : vector<8x8xf32>
    %cst_8 = arith.constant dense<0.000000e+00> : vector<8xf32>
    %17 = vector.multi_reduction <add>, %16, %cst_8 [1] : vector<8x8xf32> to vector<8xf32>
    %18 = vector.shape_cast %17 : vector<8xf32> to vector<8x1xf32>
    %19 = arith.truncf %16 : vector<8x8xf32> to vector<8x8xbf16>
    %cst_9 = arith.constant dense<0.000000e+00> : vector<8x16xf32>
    %20 = tpu.matmul %19, %0, %cst_9 {dimension_numbers = #tpu.dot_dimension_numbers<[1], [0], [0], [1], [0, 0, 1, 1], [], []>} : vector<8x8xbf16>, vector<8x16xbf16>, vector<8x16xf32> -> vector<8x16xf32>
    %21 = tpu.reciprocal %18 {approx = true} : vector<8x1xf32> -> vector<8x1xf32>
    %22 = vector.broadcast %21 : vector<8x1xf32> to vector<8x16xf32>
    %23 = arith.mulf %20, %22 : vector<8x16xf32>
    %cst_10 = arith.constant 0.000000e+00 : f32
    %24 = vector.broadcast %cst_10 : f32 to vector<8x16xf32>
    %25 = arith.cmpf ogt, %23, %24 : vector<8x16xf32>
    %cst_11 = arith.constant 0.000000e+00 : f32
    %26 = vector.broadcast %cst_11 : f32 to vector<8x16xf32>
    %27 = arith.minimumf %23, %26 : vector<8x16xf32>
    %28 = math.exp %27 : vector<8x16xf32>
    %cst_12 = arith.constant 1.000000e+00 : f32
    %29 = vector.broadcast %cst_12 : f32 to vector<8x16xf32>
    %30 = arith.subf %28, %29 : vector<8x16xf32>
    %31 = arith.select %25, %23, %30 : vector<8x16xi1>, vector<8x16xf32>
    %c0_13 = arith.constant 0 : index
    %c0_14 = arith.constant 0 : index
    %32 = vector.load %arg5[%c0_13, %c0_14] : memref<8x16xf32, #tpu.memory_space<vmem>>, vector<8x16xf32>
    tpu.vector_store %arg5[%c0_13, %c0_14], %31 {strides = array<i32>} : memref<8x16xf32, #tpu.memory_space<vmem>>, vector<8x16xf32>,
    return
  }
  func.func @transform_0(%arg0: i32) -> (i32, i32) {
    %c0_i32 = arith.constant 0 : i32
    %c0_i32_0 = arith.constant 0 : i32
    %c0_i32_1 = arith.constant 0 : i32
    return %c0_i32, %c0_i32_0 : i32, i32
  }
  func.func @transform_1(%arg0: i32) -> (i32, i32) {
    %c0_i32 = arith.constant 0 : i32
    %c0_i32_0 = arith.constant 0 : i32
    return %arg0, %c0_i32 : i32, i32
  }
  func.func @transform_2(%arg0: i32) -> (i32, i32) {
    %c0_i32 = arith.constant 0 : i32
    %c0_i32_0 = arith.constant 0 : i32
    %c0_i32_1 = arith.constant 0 : i32
    return %c0_i32, %c0_i32_0 : i32, i32
  }
  func.func @transform_3(%arg0: i32) -> (i32, i32) {
    %c0_i32 = arith.constant 0 : i32
    %c0_i32_0 = arith.constant 0 : i32
    return %arg0, %c0_i32 : i32, i32
  }
  func.func @transform_4(%arg0: i32) -> (i32, i32) {
    %c0_i32 = arith.constant 0 : i32
    %c0_i32_0 = arith.constant 0 : i32
    return %arg0, %c0_i32 : i32, i32
  }
}

</mosaic_0001>

<llo_original>
// kernel: gat_forward.5
$region0: #{gat_forward.5}
  #allocation0 [shape = 'u32[]', space=smem, size = 0x4, offset = 0x4, fixed_abs, tag = 'smem constant byte address 0x4 - core index']
  #allocation1 [shape = 'u32[72,128]{1,0:T(1,128)}', space=vmem, size = 0x9000, scoped, tag = 'internal scratch']
  %s0 = inlined_call_operand.vmem [shape: bf16[8,32], index: 0, kind: input, shape index: {}]
  %s1 = inlined_call_operand.vmem [shape: f32[8,2], index: 1, kind: input, shape index: {}]
  %s2 = inlined_call_operand.vmem [shape: f32[2,8], index: 2, kind: input, shape index: {}]
  %s3 = inlined_call_operand.vmem [shape: bf16[8,8], index: 3, kind: input, shape index: {}]
  %s4 = inlined_call_operand.vmem [shape: bf16[8,32], index: 4, kind: output, shape index: {}]
  %s5 = sld [smem:[#allocation0]]
  $region26: #{gat_forward.5} parent=0
    _
  %s7 = ssub.s32 1, %s5
  %s8 = scalar_select 0, %s7, %s5
  // Predicated region
  $region2: #{gat_forward.5} parent=0 // pred_check
    _
  $region3: #{gat_forward.5} parent=0 // pred_check_branch
    %10 = sbr.rel (0) target = $region5
  $region4: #{gat_forward.5} parent=0 // pred_region
    _
  $region5: #{gat_forward.5} parent=0 // pred_fallthru
    _
  // Predicated region
  $region6: #{gat_forward.5} parent=0 // pred_check
    _
  $region7: #{gat_forward.5} parent=0 // pred_check_branch
    %12 = sbr.rel (0) target = $region9
  $region8: #{gat_forward.5} parent=0 // pred_region
    _
  $region9: #{gat_forward.5} parent=0 // pred_fallthru
    _
  // Predicated region
  $region10: #{gat_forward.5} parent=0 // pred_check
    _
  $region11: #{gat_forward.5} parent=0 // pred_check_branch
    %14 = sbr.rel (0) target = $region13
  $region12: #{gat_forward.5} parent=0 // pred_region
    _
  $region13: #{gat_forward.5} parent=0 // pred_fallthru
    _
  // Predicated region
  $region14: #{gat_forward.5} parent=0 // pred_check
    _
  $region15: #{gat_forward.5} parent=0 // pred_check_branch
    %16 = sbr.rel (0) target = $region17
  $region16: #{gat_forward.5} parent=0 // pred_region
    _
  $region17: #{gat_forward.5} parent=0 // pred_fallthru
    _
  %v18 = vld [vmem:[%s0] sm:$0xf]
  %v19 = vld [vmem:[%s3] sm:$0xf]
  %v20 = vunpack.c.l.bf16 %v19
  %v21 = vld [vmem:[%s1] sm:$0xff]
  %v22 = vld [vmem:[%s2] sm:$0x1]
  %24 = vset.pattern.permute.xlu0 0
  %25 = vperm.xlu0 %24, %v21
  %v26 = vpop.permute.xlu0 %25
  %v28 = vperm.slane %v22, 0
  %v29 = vadd.f32 %v26, %v28
  %v30 = vmul.f32 %v29, 0.2
  %v31 = vmax.f32 %v29, %v30
  %v32 = vadd.f32 %v31, %v20
  %vm33 = vcmask 64512
  %v34 = vsel %vm33, %v32, -inf
  %35 = vmax.xlane.f32.xlu0 %v34
  %v36 = vpop.xlane.xlu0 %35
  %v37 = vsub.f32 %v32, %v36
  %v38 = vmul.f32 %v37, 1.442695
  %v39 = vpow.pop %v38
  %v40 = vsel %vm33, %v39, 0.0
  %41 = vadd.xlane.f32.xlu0 %v40
  %v42 = vpop.xlane.xlu0 %41
  %v43 = vpack.c.bf16 %v39, %v39
  %v45 = vsel %vm33, %v43, 0
  %vm47 = vcmask 1043456
  %v49 = vsel %vm47, %v18, 0
  %51 = vmatpush.bf16.msra.mxu0 0
  %52 = vmatpush.bf16.msra.mxu0 0
  %53 = vmatpush.bf16.msra.mxu0 0
  %54 = vmatpush.bf16.msra.mxu0 0
  %55 = vmatpush.bf16.msra.mxu0 0
  %56 = vmatpush.bf16.msra.mxu0 0
  %57 = vmatpush.bf16.msra.mxu0 0
  %58 = vmatpush.bf16.msra.mxu0 %v49
  %59 = vmatmul.bf16.gmra.mxu0 %v45
  %v60 = vpop.f32.mrf.mxu0
  %v61 = vadd.f32 0.0, %v60
  %v62 = vpop.f32.mrf.mxu0
  %63 = vdwg.mxu0
  %v64 = vrcp.pop %v42
  %v65 = vmul.f32 %v61, %v64
  %vm66 = vcmp.gt.f32.partialorder %v65, 0.0
  %v67 = vmin.f32 %v65, 0.0
  %v68 = vmul.f32 %v67, 1.442695
  %v69 = vpow.pop %v68
  %v70 = vsub.f32 %v69, 1.0
  %v71 = vsel %vm66, %v65, %v70
  %v72 = vld [vmem:[%s2 + $0x1] sm:$0x1]
  %73 = vset.pattern.permute.xlu0 1
  %74 = vperm.xlu0 %73, %v21
  %v75 = vpop.permute.xlu0 %74
  %v77 = vperm.slane %v72, 0
  %v78 = vadd.f32 %v75, %v77
  %v79 = vmul.f32 %v78, 0.2
  %v80 = vmax.f32 %v78, %v79
  %v81 = vadd.f32 %v80, %v20
  %v82 = vsel %vm33, %v81, -inf
  %83 = vmax.xlane.f32.xlu0 %v82
  %v84 = vpop.xlane.xlu0 %83
  %v85 = vsub.f32 %v81, %v84
  %v86 = vmul.f32 %v85, 1.442695
  %v87 = vpow.pop %v86
  %v88 = vsel %vm33, %v87, 0.0
  %89 = vadd.xlane.f32.xlu0 %v88
  %v90 = vpop.xlane.xlu0 %89
  %v91 = vpack.c.bf16 %v87, %v87
  %v93 = vunpack.c.l.b16 %v18
  %v94 = vpack.c.b16 %v93, %v93
  %95 = vrot.lane.b32.xlu0 %v94, 112
  %v96 = vpop.permute.xlu0 %95
  %v98 = vsel %vm33, %v91, 0
  %v101 = vsel %vm47, %v96, 0
  %103 = vmatpush.bf16.msra.mxu0 0
  %104 = vmatpush.bf16.msra.mxu0 0
  %105 = vmatpush.bf16.msra.mxu0 0
  %106 = vmatpush.bf16.msra.mxu0 0
  %107 = vmatpush.bf16.msra.mxu0 0
  %108 = vmatpush.bf16.msra.mxu0 0
  %109 = vmatpush.bf16.msra.mxu0 0
  %110 = vmatpush.bf16.msra.mxu0 %v101
  %111 = vmatmul.bf16.gmra.mxu0 %v98
  %v112 = vpop.f32.mrf.mxu0
  %v113 = vadd.f32 0.0, %v112
  %v114 = vpop.f32.mrf.mxu0
  %115 = vdwg.mxu0
  %v116 = vrcp.pop %v90
  %v117 = vmul.f32 %v113, %v116
  %vm118 = vcmp.gt.f32.partialorder %v117, 0.0
  %v119 = vmin.f32 %v117, 0.0
  %v120 = vmul.f32 %v119, 1.442695
  %v121 = vpow.pop %v120
  %v122 = vsub.f32 %v121, 1.0
  %v123 = vsel %vm118, %v117, %v122
  %125 = vrot.lane.b32.xlu0 %v123, 16
  %v126 = vpop.permute.xlu0 %125
  %vm128 = vcmask 130048
  %v129 = vsel %vm128, %v71, %v126
  %v130 = vpack.c.bf16 %v129, %v129
  %vm131 = vcmask 257024
  %132 = vst.msk [vmem:[%s4] sm:$0xf] %vm131, %v130
  // Predicated region
  $region18: #{gat_forward.5} parent=0 // pred_check
    _
  $region19: #{gat_forward.5} parent=0 // pred_check_branch
    %134 = sbr.rel (0) target = $region21
  $region20: #{gat_forward.5} parent=0 // pred_region
    _
  $region21: #{gat_forward.5} parent=0 // pred_fallthru
    _
  // Predicated region
  $region22: #{gat_forward.5} parent=0 // pred_check
    _
  $region23: #{gat_forward.5} parent=0 // pred_check_branch
    %136 = sbr.rel (0) target = $region25
  $region24: #{gat_forward.5} parent=0 // pred_region
    _
  $region25: #{gat_forward.5} parent=0 // pred_fallthru
    _

// kernel: gat_forward.4
$region0: #{gat_forward.4}
  #allocation0 [shape = 'u32[]', space=smem, size = 0x4, offset = 0x4, fixed_abs, tag = 'smem constant byte address 0x4 - core index']
  #allocation1 [shape = 'u32[72,128]{1,0:T(1,128)}', space=vmem, size = 0x9000, scoped, tag = 'internal scratch']
  %s0 = inlined_call_operand.vmem [shape: bf16[8,32], index: 0, kind: input, shape index: {}]
  %s1 = inlined_call_operand.vmem [shape: bf16[32,36], index: 1, kind: input, shape index: {}]
  %s2 = inlined_call_operand.vmem [shape: bf16[8,32], index: 2, kind: output, shape index: {0}]
  %s3 = inlined_call_operand.vmem [shape: f32[8,4], index: 3, kind: output, shape index: {1}]
  %4 = xla_tuple %s2, %s3
  %s5 = sld [smem:[#allocation0]]
  $region26: #{gat_forward.4} parent=0
    _
  %s7 = ssub.s32 1, %s5
  %s8 = scalar_select 0, %s7, %s5
  // Predicated region
  $region2: #{gat_forward.4} parent=0 // pred_check
    _
  $region3: #{gat_forward.4} parent=0 // pred_check_branch
    %10 = sbr.rel (0) target = $region5
  $region4: #{gat_forward.4} parent=0 // pred_region
    _
  $region5: #{gat_forward.4} parent=0 // pred_fallthru
    _
  // Predicated region
  $region6: #{gat_forward.4} parent=0 // pred_check
    _
  $region7: #{gat_forward.4} parent=0 // pred_check_branch
    %12 = sbr.rel (0) target = $region9
  $region8: #{gat_forward.4} parent=0 // pred_region
    _
  $region9: #{gat_forward.4} parent=0 // pred_fallthru
    _
  %v14 = vld [vmem:[%s0] sm:$0xf]
  %v15 = vld [vmem:[%s1] sm:$0xf]
  %v16 = vld [vmem:[%s1 + $0x4] sm:$0xf]
  %v17 = vld [vmem:[%s1 + $0x8] sm:$0xf]
  %v18 = vld [vmem:[%s1 + $0xc] sm:$0xf]
  %v23 = vunpack.c.l.b16 %v15
  %v24 = vunpack.c.l.b16 %v16
  %v25 = vunpack.c.l.b16 %v17
  %v26 = vunpack.c.l.b16 %v18
  %v27 = vpack.c.b16 %v24, %v23
  %v28 = vpack.c.b16 %v26, %v25
  %vm31 = vcmask 261120
  %v33 = vsel %vm31, %v14, 0
  %35 = vmatpush.bf16.msra.mxu0 0
  %36 = vmatpush.bf16.msra.mxu0 0
  %37 = vmatpush.bf16.msra.mxu0 0
  %38 = vmatpush.bf16.msra.mxu0 0
  %39 = vmatpush.bf16.msra.mxu0 0
  %40 = vmatpush.bf16.msra.mxu0 0
  %41 = vmatpush.bf16.msra.mxu0 %v28
  %42 = vmatpush.bf16.msra.mxu0 %v27
  %43 = vmatmul.bf16.gmra.mxu0 %v33
  %v44 = vpop.f32.mrf.mxu0
  %v45 = vadd.f32 0.0, %v44
  %v46 = vpop.f32.mrf.mxu0
  %47 = vdwg.mxu0
  %v48 = vpack.c.bf16 %v45, %v45
  %vm49 = vcmask 257024
  %50 = vst.msk [vmem:[%s2] sm:$0xf] %vm49, %v48
  %52 = vrot.lane.b32.xlu0 %v45, 96
  %v53 = vpop.permute.xlu0 %52
  %vm55 = vcmask 31744
  %56 = vst.msk [vmem:[%s3] sm:$0xff] %vm55, %v53
  // Predicated region
  $region10: #{gat_forward.4} parent=0 // pred_check
    _
  $region11: #{gat_forward.4} parent=0 // pred_check_branch
    %58 = sbr.rel (0) target = $region13
  $region12: #{gat_forward.4} parent=0 // pred_region
    _
  $region13: #{gat_forward.4} parent=0 // pred_fallthru
    _
  // Predicated region
  $region14: #{gat_forward.4} parent=0 // pred_check
    _
  $region15: #{gat_forward.4} parent=0 // pred_check_branch
    %60 = sbr.rel (0) target = $region17
  $region16: #{gat_forward.4} parent=0 // pred_region
    _
  $region17: #{gat_forward.4} parent=0 // pred_fallthru
    _
  // Predicated region
  $region18: #{gat_forward.4} parent=0 // pred_check
    _
  $region19: #{gat_forward.4} parent=0 // pred_check_branch
    %62 = sbr.rel (0) target = $region21
  $region20: #{gat_forward.4} parent=0 // pred_region
    _
  $region21: #{gat_forward.4} parent=0 // pred_fallthru
    _
  // Predicated region
  $region22: #{gat_forward.4} parent=0 // pred_check
    _
  $region23: #{gat_forward.4} parent=0 // pred_check_branch
    %64 = sbr.rel (0) target = $region25
  $region24: #{gat_forward.4} parent=0 // pred_region
    _
  $region25: #{gat_forward.4} parent=0 // pred_fallthru
    _

// kernel: gat_forward.6
$region0: #{gat_forward.6}
  #allocation0 [shape = 'u32[]', space=smem, size = 0x4, offset = 0x4, fixed_abs, tag = 'smem constant byte address 0x4 - core index']
  #allocation1 [shape = 'u32[72,128]{1,0:T(1,128)}', space=vmem, size = 0x9000, scoped, tag = 'internal scratch']
  %s0 = inlined_call_operand.vmem [shape: bf16[8,32], index: 0, kind: input, shape index: {}]
  %s1 = inlined_call_operand.vmem [shape: bf16[32,18], index: 1, kind: input, shape index: {}]
  %s2 = inlined_call_operand.vmem [shape: bf16[8,16], index: 2, kind: output, shape index: {0}]
  %s3 = inlined_call_operand.vmem [shape: f32[8,2], index: 3, kind: output, shape index: {1}]
  %4 = xla_tuple %s2, %s3
  %s5 = sld [smem:[#allocation0]]
  $region26: #{gat_forward.6} parent=0
    _
  %s7 = ssub.s32 1, %s5
  %s8 = scalar_select 0, %s7, %s5
  // Predicated region
  $region2: #{gat_forward.6} parent=0 // pred_check
    _
  $region3: #{gat_forward.6} parent=0 // pred_check_branch
    %10 = sbr.rel (0) target = $region5
  $region4: #{gat_forward.6} parent=0 // pred_region
    _
  $region5: #{gat_forward.6} parent=0 // pred_fallthru
    _
  // Predicated region
  $region6: #{gat_forward.6} parent=0 // pred_check
    _
  $region7: #{gat_forward.6} parent=0 // pred_check_branch
    %12 = sbr.rel (0) target = $region9
  $region8: #{gat_forward.6} parent=0 // pred_region
    _
  $region9: #{gat_forward.6} parent=0 // pred_fallthru
    _
  %v14 = vld [vmem:[%s0] sm:$0xf]
  %v15 = vld [vmem:[%s1] sm:$0xf]
  %v16 = vld [vmem:[%s1 + $0x4] sm:$0xf]
  %v17 = vld [vmem:[%s1 + $0x8] sm:$0xf]
  %v18 = vld [vmem:[%s1 + $0xc] sm:$0xf]
  %v23 = vunpack.c.l.b16 %v15
  %v24 = vunpack.c.l.b16 %v16
  %v25 = vunpack.c.l.b16 %v17
  %v26 = vunpack.c.l.b16 %v18
  %v27 = vpack.c.b16 %v24, %v23
  %v28 = vpack.c.b16 %v26, %v25
  %vm31 = vcmask 261120
  %v33 = vsel %vm31, %v14, 0
  %35 = vmatpush.bf16.msra.mxu0 0
  %36 = vmatpush.bf16.msra.mxu0 0
  %37 = vmatpush.bf16.msra.mxu0 0
  %38 = vmatpush.bf16.msra.mxu0 0
  %39 = vmatpush.bf16.msra.mxu0 0
  %40 = vmatpush.bf16.msra.mxu0 0
  %41 = vmatpush.bf16.msra.mxu0 %v28
  %42 = vmatpush.bf16.msra.mxu0 %v27
  %43 = vmatmul.bf16.gmra.mxu0 %v33
  %v44 = vpop.f32.mrf.mxu0
  %v45 = vadd.f32 0.0, %v44
  %v46 = vpop.f32.mrf.mxu0
  %47 = vdwg.mxu0
  %v48 = vpack.c.bf16 %v45, %v45
  %vm49 = vcmask 125952
  %50 = vst.msk [vmem:[%s2] sm:$0xf] %vm49, %v48
  %52 = vrot.lane.b32.xlu0 %v45, 112
  %v53 = vpop.permute.xlu0 %52
  %vm55 = vcmask 15360
  %56 = vst.msk [vmem:[%s3] sm:$0xff] %vm55, %v53
  // Predicated region
  $region10: #{gat_forward.6} parent=0 // pred_check
    _
  $region11: #{gat_forward.6} parent=0 // pred_check_branch
    %58 = sbr.rel (0) target = $region13
  $region12: #{gat_forward.6} parent=0 // pred_region
    _
  $region13: #{gat_forward.6} parent=0 // pred_fallthru
    _
  // Predicated region
  $region14: #{gat_forward.6} parent=0 // pred_check
    _
  $region15: #{gat_forward.6} parent=0 // pred_check_branch
    %60 = sbr.rel (0) target = $region17
  $region16: #{gat_forward.6} parent=0 // pred_region
    _
  $region17: #{gat_forward.6} parent=0 // pred_fallthru
    _
  // Predicated region
  $region18: #{gat_forward.6} parent=0 // pred_check
    _
  $region19: #{gat_forward.6} parent=0 // pred_check_branch
    %62 = sbr.rel (0) target = $region21
  $region20: #{gat_forward.6} parent=0 // pred_region
    _
  $region21: #{gat_forward.6} parent=0 // pred_fallthru
    _
  // Predicated region
  $region22: #{gat_forward.6} parent=0 // pred_check
    _
  $region23: #{gat_forward.6} parent=0 // pred_check_branch
    %64 = sbr.rel (0) target = $region25
  $region24: #{gat_forward.6} parent=0 // pred_region
    _
  $region25: #{gat_forward.6} parent=0 // pred_fallthru
    _

// kernel: gat_forward.7
$region0: #{gat_forward.7}
  #allocation0 [shape = 'u32[]', space=smem, size = 0x4, offset = 0x4, fixed_abs, tag = 'smem constant byte address 0x4 - core index']
  #allocation1 [shape = 'u32[72,128]{1,0:T(1,128)}', space=vmem, size = 0x9000, scoped, tag = 'internal scratch']
  %s0 = inlined_call_operand.vmem [shape: bf16[8,16], index: 0, kind: input, shape index: {}]
  %s1 = inlined_call_operand.vmem [shape: f32[8,1], index: 1, kind: input, shape index: {}]
  %s2 = inlined_call_operand.vmem [shape: f32[1,8], index: 2, kind: input, shape index: {}]
  %s3 = inlined_call_operand.vmem [shape: bf16[8,8], index: 3, kind: input, shape index: {}]
  %s4 = inlined_call_operand.hbm [shape: f32[8,16], index: 4, kind: output, shape index: {}]
  %s5 = sld [smem:[#allocation0]]
  $region26: #{gat_forward.7} parent=0
    _
  %s7 = ssub.s32 1, %s5
  %s8 = scalar_select 0, %s7, %s5
  $region1: #{gat_forward.7} parent=0
    #allocation2 [shape = 'u8[4096]{0}', space=vmem, size = 0x1000, scoped, tag = 'output window, operand 0, single buffered']
    #allocation3 [shape = 's32[1]{0}', space=sflag, size = 0x4, scoped, tag = 'scoped memory for gat_forward.7']
    %9 = vsyncpa [#allocation3], 0
    // Predicated region
    $region2: #{gat_forward.7} parent=1 // pred_check
      _
    $region3: #{gat_forward.7} parent=1 // pred_check_branch
      %11 = sbr.rel (0) target = $region5
    $region4: #{gat_forward.7} parent=1 // pred_region
      _
    $region5: #{gat_forward.7} parent=1 // pred_fallthru
      _
    // Predicated region
    $region6: #{gat_forward.7} parent=1 // pred_check
      _
    $region7: #{gat_forward.7} parent=1 // pred_check_branch
      %13 = sbr.rel (0) target = $region9
    $region8: #{gat_forward.7} parent=1 // pred_region
      _
    $region9: #{gat_forward.7} parent=1 // pred_fallthru
      _
    // Predicated region
    $region10: #{gat_forward.7} parent=1 // pred_check
      _
    $region11: #{gat_forward.7} parent=1 // pred_check_branch
      %15 = sbr.rel (0) target = $region13
    $region12: #{gat_forward.7} parent=1 // pred_region
      _
    $region13: #{gat_forward.7} parent=1 // pred_fallthru
      _
    // Predicated region
    $region14: #{gat_forward.7} parent=1 // pred_check
      _
    $region15: #{gat_forward.7} parent=1 // pred_check_branch
      %17 = sbr.rel (0) target = $region17
    $region16: #{gat_forward.7} parent=1 // pred_region
      _
    $region17: #{gat_forward.7} parent=1 // pred_fallthru
      _
    %v19 = vld [vmem:[%s0] sm:$0xf]
    %v20 = vld [vmem:[%s3] sm:$0xf]
    %v21 = vunpack.c.l.bf16 %v20
    %v22 = vld [vmem:[%s1] sm:$0xff]
    %v23 = vld [vmem:[%s2] sm:$0x1]
    %25 = vset.pattern.permute.xlu0 0
    %26 = vperm.xlu0 %25, %v22
    %v27 = vpop.permute.xlu0 %26
    %v30 = vperm.slane %v23, 0
    %v32 = vadd.f32 %v27, %v30
    %v33 = vmul.f32 %v32, 0.2
    %v34 = vmax.f32 %v32, %v33
    %v35 = vadd.f32 %v34, %v21
    %vm36 = vcmask 64512
    %v37 = vsel %vm36, %v35, -inf
    %38 = vmax.xlane.f32.xlu0 %v37
    %v39 = vpop.xlane.xlu0 %38
    %v40 = vsub.f32 %v35, %v39
    %v41 = vmul.f32 %v40, 1.442695
    %v42 = vpow.pop %v41
    %v43 = vsel %vm36, %v42, 0.0
    %44 = vadd.xlane.f32.xlu0 %v43
    %v45 = vpop.xlane.xlu0 %44
    %v46 = vpack.c.bf16 %v42, %v42
    %v48 = vsel %vm36, %v46, 0
    %vm50 = vcmask 1043456
    %v52 = vsel %vm50, %v19, 0
    %54 = vmatpush.bf16.msra.mxu0 0
    %55 = vmatpush.bf16.msra.mxu0 0
    %56 = vmatpush.bf16.msra.mxu0 0
    %57 = vmatpush.bf16.msra.mxu0 0
    %58 = vmatpush.bf16.msra.mxu0 0
    %59 = vmatpush.bf16.msra.mxu0 0
    %60 = vmatpush.bf16.msra.mxu0 0
    %61 = vmatpush.bf16.msra.mxu0 %v52
    %62 = vmatmul.bf16.gmra.mxu0 %v48
    %v63 = vpop.f32.mrf.mxu0
    %v64 = vadd.f32 0.0, %v63
    %v65 = vpop.f32.mrf.mxu0
    %66 = vdwg.mxu0
    %v67 = vrcp.pop %v45
    %v68 = vmul.f32 %v64, %v67
    %vm69 = vcmp.gt.f32.partialorder %v68, 0.0
    %v70 = vmin.f32 %v68, 0.0
    %v71 = vmul.f32 %v70, 1.442695
    %v72 = vpow.pop %v71
    %v73 = vsub.f32 %v72, 1.0
    %v74 = vsel %vm69, %v68, %v73
    %vm75 = vcmask 130048
    %76 = vst.msk [vmem:[#allocation2] sm:$0xff] %vm75, %v74
    // Predicated region
    $region18: #{gat_forward.7} parent=1 // pred_check
      _
    $region19: #{gat_forward.7} parent=1 // pred_check_branch
      %78 = sbr.rel (0) target = $region21
    $region20: #{gat_forward.7} parent=1 // pred_region
      %80 = vsyncadd [#allocation3], 0
      %s82 = sshll.u32 [#allocation2], 4
      %s83 = int_to_ptr.vmem [resolvable:$true] %s82
      %s84 = sshll.u32 %s4, 4
      %s85 = int_to_ptr.hbm [resolvable:$true] %s84
      %87 = dma.vmem_to_hbm [thread:$0]  %s83, 128, %s85, [#allocation3]
    $region21: #{gat_forward.7} parent=1 // pred_fallthru
      _
    // Predicated region
    $region22: #{gat_forward.7} parent=1 // pred_check
      _
    $region23: #{gat_forward.7} parent=1 // pred_check_branch
      %89 = sbr.rel (0) target = $region25
    $region24: #{gat_forward.7} parent=1 // pred_region
      %91 = dma.done [#allocation3], 128
    $region25: #{gat_forward.7} parent=1 // pred_fallthru
      _
    %92 = vsyncpa [#allocation3], 1

</llo_original>
